<compile_context>
chip_gen: v5e
topology: v5e:2x2
jax: 0.10.0
libtpu: 0.0.40
codegen_flags: <defaults>
</compile_context>

<pallas_src>
import functools

import jax
import jax.numpy as jnp
from jax.experimental import pallas as pl
from jax.experimental.pallas import tpu as pltpu


# Total budget for the software-pipelined (double-buffered) per-step tiles.
# v5e / v6e (128 MiB VMEM) tolerate 8-16 MiB; v7x (64 MiB physical, 32 MiB
# scoped default) wants the patch tile <= ~4 MiB per buffer, so stay at 8 MiB.
_TILE_BUDGET_BYTES = 8 * 1024 * 1024
# Prefer >= 4 grid steps: 2 TensorCores (v7x megacore) x pipeline depth 2.
_MIN_GRID_STEPS = 4


def _make_embed_kernel(g, K, E):
    def kernel(p_ref, w_ref, pb_ref, o_ref):
        # p_ref: (t_r, g*K) gemm dtype, w_ref: (K, E) gemm dtype,
        # pb_ref: (t_r, g*E) f32, o_ref: (t_r, g*E) out dtype.
        w = w_ref[...]
        for q in range(g):
            acc = jnp.dot(p_ref[:, q * K:(q + 1) * K], w,
                          preferred_element_type=jnp.float32)
            o_ref[:, q * E:(q + 1) * E] = (
                acc + pb_ref[:, q * E:(q + 1) * E]).astype(o_ref.dtype)
    return kernel


def _pick_row_tile(n_rows_per_batch, total_rows, row_bytes, sublane,
                   budget_bytes=_TILE_BUDGET_BYTES, min_grid=_MIN_GRID_STEPS):
    """Divisor of n_rows_per_batch: sublane-friendly, within budget, grid>=min."""
    divisors = [d for d in range(1, n_rows_per_batch + 1)
                if n_rows_per_batch % d == 0]
    cands = [d for d in divisors if d % sublane == 0]
    if not cands and sublane > 8:
        # Correct but possibly relayout-heavy for packed dtypes.
        cands = [d for d in divisors if d % 8 == 0]
    if not cands:
        return None
    fitting = [d for d in cands if d * row_bytes <= budget_bytes]
    if not fitting:
        fitting = [min(cands)]
    preferred = [d for d in fitting if total_rows // d >= min_grid]
    return max(preferred) if preferred else max(fitting)


@functools.partial(
    jax.jit,
    static_argnames=("patch_size", "gemm_dtype", "single_buffer_weight"))
def embeddings_forward(x, conv_w, conv_b, pos_embed, *, patch_size,
                       gemm_dtype=None, single_buffer_weight=True):
    """Forward pass of Embeddings.

    x:         (B, C, D, H, W)
    conv_w:    (E, C, p, p, p)   PyTorch Conv3d weight layout
    conv_b:    (E,)
    pos_embed: (1, n_patches, E)
    returns:   (B, n_patches, E) in x.dtype
    """
    B, C, D, H, W = x.shape
    p = patch_size
    E = conv_w.shape[0]
    nd, nh, nw = D // p, H // p, W // p
    n_patches = nd * nh * nw
    K = C * p * p * p
    out_dtype = x.dtype

    # Explicit GEMM operand dtype (mixed-dtype hazard from review).
    if gemm_dtype is None:
        gemm_dtype = jnp.promote_types(x.dtype, conv_w.dtype)
    gemm_dtype = jnp.dtype(gemm_dtype)
    gemm_isize = gemm_dtype.itemsize
    out_isize = jnp.dtype(out_dtype).itemsize

    # Lane-packing factor: g consecutive patches per 128-lane output row.
    if E <= 128 and 128 % E == 0 and n_patches % (128 // E) == 0:
        g = 128 // E
    else:
        g = 1                       # fallback: correct, lane-masked stores
    M = B * n_patches
    R = M // g                      # packed output rows over the whole batch
    n_rows_per_batch = n_patches // g
    gK, gE = g * K, g * E

    # --- patch extraction (glue; K ordered (c, kd, kh, kw) like Conv3d) -----
    xp = x.reshape(B, C, nd, p, nh, p, nw, p)
    xp = xp.transpose(0, 2, 4, 6, 1, 3, 5, 7)   # (B, nd, nh, nw, C, pd, ph, pw)
    patches = xp.reshape(R, gK).astype(gemm_dtype)

    # Plain (K, E) weight — no block-diagonal inflation.
    w_mat = conv_w.reshape(E, K).T.astype(gemm_dtype)

    # Conv bias folded into the per-patch position table (kept in f32).
    pos_bias = (pos_embed.reshape(n_patches, E).astype(jnp.float32)
                + conv_b.astype(jnp.float32)[None, :])
    posb = pos_bias.reshape(n_rows_per_batch, gE)

    # --- tiling --------------------------------------------------------------
    sublane = {1: 32, 2: 16}.get(gemm_isize, 8)
    # Per packed row: all software-pipelined (double-buffered) operands.
    row_bytes = 2 * gK * gemm_isize + 2 * gE * out_isize + 2 * gE * 4
    t_r = _pick_row_tile(n_rows_per_batch, R, row_bytes, sublane)

    if t_r is not None:
        blocks_per_batch = n_rows_per_batch // t_r
        pos_operand = posb          # re-read per batch via wrapping index map
        pos_index_map = lambda i: (i % blocks_per_batch, 0)
    else:
        # TODO(synk): configs where n_patches/g has no multiple-of-8 divisor;
        # last-resort path batch-broadcasts the pos table in HBM.
        pos_operand = jnp.broadcast_to(
            pos_bias[None], (B, n_patches, E)).reshape(R, gE)
        divs = [d for d in range(8, R + 1, 8)
                if R % d == 0 and d * row_bytes <= _TILE_BUDGET_BYTES]
        t_r = max(divs) if divs else R
        pos_index_map = lambda i: (i, 0)

    grid = (R // t_r,)

    # Weight operand: constant block index; single-buffer it when supported.
    w_spec_kwargs = {}
    if single_buffer_weight and hasattr(pl, "Buffered"):
        w_spec_kwargs = dict(pipeline_mode=pl.Buffered(1))
    w_spec = pl.BlockSpec((K, E), lambda i: (0, 0), **w_spec_kwargs)

    weight_copies = 1 if w_spec_kwargs else 2
    footprint = t_r * row_bytes + weight_copies * K * E * gemm_isize
    vmem_limit = int(min(64 * 1024 * 1024,
                         max(32 * 1024 * 1024, footprint + footprint // 4)))

    cost = pl.CostEstimate(
        flops=2 * R * gK * E,
        transcendentals=0,
        bytes_accessed=(R * gK * gemm_isize + K * E * gemm_isize
                        + pos_operand.shape[0] * gE * 4 + R * gE * out_isize),
    )

    out = pl.pallas_call(
        _make_embed_kernel(g, K, E),
        out_shape=jax.ShapeDtypeStruct((R, gE), out_dtype),
        grid_spec=pltpu.PrefetchScalarGridSpec(
            num_scalar_prefetch=0,
            grid=grid,
            in_specs=[
                pl.BlockSpec((t_r, gK), lambda i: (i, 0)),   # packed patches
                w_spec,                                      # resident (K, E) weight
                pl.BlockSpec((t_r, gE), pos_index_map),      # f32 pos + bias
            ],
            out_specs=pl.BlockSpec((t_r, gE), lambda i: (i, 0)),
        ),
        compiler_params=pltpu.CompilerParams(
            dimension_semantics=("parallel",),
            vmem_limit_bytes=vmem_limit,
            # TODO(synk): verify in the HLO that the 8-D patch transpose fuses
            # into the operand DMA; if `patches` is still materialized in HBM,
            # drop the flag or read `x` directly with a (b, nd, nh) grid.
            allow_input_fusion=[True, False, False],
        ),
        cost_estimate=cost,
    )(patches, w_mat, pos_operand)

    # Packed (R, g*E) rows are exactly the row-major layout of (B, n_patches, E).
    return out.reshape(B, n_patches, E)


def reference_forward(x, conv_w, conv_b, pos_embed, *, patch_size):
    """Plain-JAX reference mirroring the PyTorch module (f32 accumulation)."""
    out = jax.lax.conv_general_dilated(
        x, conv_w,
        window_strides=(patch_size,) * 3,
        padding="VALID",
        dimension_numbers=("NCDHW", "OIDHW", "NCDHW"),
        preferred_element_type=jnp.float32,
    ) + conv_b.astype(jnp.float32)[None, :, None, None, None]
    B, E = out.shape[0], out.shape[1]
    out = out.reshape(B, E, -1).transpose(0, 2, 1)   # flatten(2) + transpose(-1,-2)
    return out + pos_embed.astype(jnp.float32)


if __name__ == "__main__":
    # Small shapes consistent with the module:
    # input_dim=4, embed_dim=32, cube_size=(16,16,16), patch_size=4, dropout=0.1
    B, C = 2, 4
    D = H = W = 16
    patch_size = 4
    embed_dim = 32
    n_patches = (D // patch_size) * (H // patch_size) * (W // patch_size)  # 64

    key = jax.random.PRNGKey(0)
    kx, kw, kb, kp = jax.random.split(key, 4)

    x = jax.random.normal(kx, (B, C, D, H, W), dtype=jnp.float32)
    conv_w = jax.random.normal(
        kw, (embed_dim, C, patch_size, patch_size, patch_size), dtype=jnp.float32
    ) * 0.02
    conv_b = jax.random.normal(kb, (embed_dim,), dtype=jnp.float32) * 0.02
    # Module inits position_embeddings to zeros; use small random values so the
    # fused add is actually exercised/verified.
    pos_embed = jax.random.normal(
        kp, (1, n_patches, embed_dim), dtype=jnp.float32) * 0.02

    def run(**kw):
        out = embeddings_forward(x, conv_w, conv_b, pos_embed,
                                 patch_size=patch_size, **kw)
        return jax.block_until_ready(out)

    # 1) f32 GEMM path (bit-compatible accumulation vs. the conv reference).
    sbw = True
    try:
        out_f32 = run(single_buffer_weight=sbw)
    except Exception:
        # Compatibility shim: this JAX/Mosaic does not accept
        # pipeline_mode=pl.Buffered(1) on a pallas_call BlockSpec.
        sbw = False
        out_f32 = run(single_buffer_weight=sbw)

    ref_f32 = reference_forward(x, conv_w, conv_b, pos_embed,
                                patch_size=patch_size)
    assert out_f32.shape == (B, n_patches, embed_dim), out_f32.shape
    err_f32 = float(jnp.abs(out_f32 - ref_f32).max())
    assert jnp.allclose(out_f32, ref_f32, atol=1e-4, rtol=1e-4), err_f32

    # 2) bf16-GEMM path (halved HBM traffic / weight VMEM); compare against a
    #    bf16-consistent reference (same rounded operands, f32 accumulation).
    out_bf16 = run(gemm_dtype=jnp.bfloat16, single_buffer_weight=sbw)
    ref_bf16 = reference_forward(x.astype(jnp.bfloat16),
                                 conv_w.astype(jnp.bfloat16),
                                 conv_b, pos_embed, patch_size=patch_size)
    err_bf16 = float(jnp.abs(out_bf16 - ref_bf16).max())
    assert jnp.allclose(out_bf16, ref_bf16, atol=5e-3, rtol=5e-3), err_bf16

    print("KERNEL_OK")
</pallas_src>

<mosaic_0001>
module attributes {stable_mosaic.version = 11 : i64} {
  func.func @kernel(%arg0: i32, %arg1: memref<8x1024xf32, #tpu.memory_space<vmem>>, %arg2: memref<256x32xf32, #tpu.memory_space<vmem>>, %arg3: memref<8x128xf32, #tpu.memory_space<vmem>>, %arg4: memref<8x128xf32, #tpu.memory_space<vmem>>) attributes {dimension_semantics = [#tpu.dimension_semantics<parallel>], iteration_bounds = array<i64: 4>, scalar_prefetch = 0 : i64, scratch_operands = 0 : i64, tpu.core_type = #tpu.core_type<tc>, window_params = [{transform_indices = @transform_0, window_bounds = array<i64: 8, 1024>}, {pipeline_mode = #tpu.pipeline_mode<synchronous>, transform_indices = @transform_1, window_bounds = array<i64: 256, 32>}, {transform_indices = @transform_2, window_bounds = array<i64: 8, 128>}, {transform_indices = @transform_3, window_bounds = array<i64: 8, 128>}]} {
    %c0 = arith.constant 0 : index
    %c0_0 = arith.constant 0 : index
    %0 = vector.load %arg2[%c0, %c0_0] : memref<256x32xf32, #tpu.memory_space<vmem>>, vector<256x32xf32>
    %c0_1 = arith.constant 0 : index
    %c0_2 = arith.constant 0 : index
    %1 = vector.load %arg1[%c0_1, %c0_2] : memref<8x1024xf32, #tpu.memory_space<vmem>>, vector<8x256xf32>
    %cst = arith.constant dense<0.000000e+00> : vector<8x32xf32>
    %2 = tpu.matmul %1, %0, %cst {dimension_numbers = #tpu.dot_dimension_numbers<[1], [0], [0], [1], [0, 0, 1, 1], [], []>} : vector<8x256xf32>, vector<256x32xf32>, vector<8x32xf32> -> vector<8x32xf32>
    %c0_3 = arith.constant 0 : index
    %c0_4 = arith.constant 0 : index
    %3 = vector.load %arg3[%c0_3, %c0_4] : memref<8x128xf32, #tpu.memory_space<vmem>>, vector<8x32xf32>
    %4 = arith.addf %2, %3 : vector<8x32xf32>
    %c0_5 = arith.constant 0 : index
    %c0_6 = arith.constant 0 : index
    %5 = vector.load %arg4[%c0_5, %c0_6] : memref<8x128xf32, #tpu.memory_space<vmem>>, vector<8x32xf32>
    tpu.vector_store %arg4[%c0_5, %c0_6], %4 {strides = array<i32>} : memref<8x128xf32, #tpu.memory_space<vmem>>, vector<8x32xf32>,
    %c0_7 = arith.constant 0 : index
    %c256 = arith.constant 256 : index
    %6 = vector.load %arg1[%c0_7, %c256] : memref<8x1024xf32, #tpu.memory_space<vmem>>, vector<8x256xf32>
    %cst_8 = arith.constant dense<0.000000e+00> : vector<8x32xf32>
    %7 = tpu.matmul %6, %0, %cst_8 {dimension_numbers = #tpu.dot_dimension_numbers<[1], [0], [0], [1], [0, 0, 1, 1], [], []>} : vector<8x256xf32>, vector<256x32xf32>, vector<8x32xf32> -> vector<8x32xf32>
    %c0_9 = arith.constant 0 : index
    %c32 = arith.constant 32 : index
    %8 = vector.load %arg3[%c0_9, %c32] : memref<8x128xf32, #tpu.memory_space<vmem>>, vector<8x32xf32>
    %9 = arith.addf %7, %8 : vector<8x32xf32>
    %c0_10 = arith.constant 0 : index
    %c32_11 = arith.constant 32 : index
    %10 = vector.load %arg4[%c0_10, %c32_11] : memref<8x128xf32, #tpu.memory_space<vmem>>, vector<8x32xf32>
    tpu.vector_store %arg4[%c0_10, %c32_11], %9 {strides = array<i32>} : memref<8x128xf32, #tpu.memory_space<vmem>>, vector<8x32xf32>,
    %c0_12 = arith.constant 0 : index
    %c512 = arith.constant 512 : index
    %11 = vector.load %arg1[%c0_12, %c512] : memref<8x1024xf32, #tpu.memory_space<vmem>>, vector<8x256xf32>
    %cst_13 = arith.constant dense<0.000000e+00> : vector<8x32xf32>
    %12 = tpu.matmul %11, %0, %cst_13 {dimension_numbers = #tpu.dot_dimension_numbers<[1], [0], [0], [1], [0, 0, 1, 1], [], []>} : vector<8x256xf32>, vector<256x32xf32>, vector<8x32xf32> -> vector<8x32xf32>
    %c0_14 = arith.constant 0 : index
    %c64 = arith.constant 64 : index
    %13 = vector.load %arg3[%c0_14, %c64] : memref<8x128xf32, #tpu.memory_space<vmem>>, vector<8x32xf32>
    %14 = arith.addf %12, %13 : vector<8x32xf32>
    %c0_15 = arith.constant 0 : index
    %c64_16 = arith.constant 64 : index
    %15 = vector.load %arg4[%c0_15, %c64_16] : memref<8x128xf32, #tpu.memory_space<vmem>>, vector<8x32xf32>
    tpu.vector_store %arg4[%c0_15, %c64_16], %14 {strides = array<i32>} : memref<8x128xf32, #tpu.memory_space<vmem>>, vector<8x32xf32>,
    %c0_17 = arith.constant 0 : index
    %c768 = arith.constant 768 : index
    %16 = vector.load %arg1[%c0_17, %c768] : memref<8x1024xf32, #tpu.memory_space<vmem>>, vector<8x256xf32>
    %cst_18 = arith.constant dense<0.000000e+00> : vector<8x32xf32>
    %17 = tpu.matmul %16, %0, %cst_18 {dimension_numbers = #tpu.dot_dimension_numbers<[1], [0], [0], [1], [0, 0, 1, 1], [], []>} : vector<8x256xf32>, vector<256x32xf32>, vector<8x32xf32> -> vector<8x32xf32>
    %c0_19 = arith.constant 0 : index
    %c96 = arith.constant 96 : index
    %18 = vector.load %arg3[%c0_19, %c96] : memref<8x128xf32, #tpu.memory_space<vmem>>, vector<8x32xf32>
    %19 = arith.addf %17, %18 : vector<8x32xf32>
    %c0_20 = arith.constant 0 : index
    %c96_21 = arith.constant 96 : index
    %20 = vector.load %arg4[%c0_20, %c96_21] : memref<8x128xf32, #tpu.memory_space<vmem>>, vector<8x32xf32>
    tpu.vector_store %arg4[%c0_20, %c96_21], %19 {strides = array<i32>} : memref<8x128xf32, #tpu.memory_space<vmem>>, vector<8x32xf32>,
    return
  }
  func.func @transform_0(%arg0: i32) -> (i32, i32) {
    %c0_i32 = arith.constant 0 : i32
    %c0_i32_0 = arith.constant 0 : i32
    return %arg0, %c0_i32 : i32, i32
  }
  func.func @transform_1(%arg0: i32) -> (i32, i32) {
    %c0_i32 = arith.constant 0 : i32
    %c0_i32_0 = arith.constant 0 : i32
    %c0_i32_1 = arith.constant 0 : i32
    return %c0_i32, %c0_i32_0 : i32, i32
  }
  func.func @transform_2(%arg0: i32) -> (i32, i32) {
    %c2_i32 = arith.constant 2 : i32
    %c0_i32 = arith.constant 0 : i32
    %0 = arith.cmpi eq, %c2_i32, %c0_i32 : i32
    %c1_i32 = arith.constant 1 : i32
    %1 = arith.select %0, %c1_i32, %c2_i32 : i32
    %2 = arith.remsi %arg0, %1 : i32
    %c0_i32_0 = arith.constant 0 : i32
    %3 = arith.cmpi ne, %2, %c0_i32_0 : i32
    %c0_i32_1 = arith.constant 0 : i32
    %4 = arith.cmpi slt, %2, %c0_i32_1 : i32
    %c0_i32_2 = arith.constant 0 : i32
    %5 = arith.cmpi slt, %1, %c0_i32_2 : i32
    %6 = arith.xori %4, %5 : i1
    %7 = arith.andi %6, %3 : i1
    %8 = arith.addi %2, %1 : i32
    %9 = arith.select %7, %8, %2 : i32
    %c0_i32_3 = arith.constant 0 : i32
    %c0_i32_4 = arith.constant 0 : i32
    return %9, %c0_i32_3 : i32, i32
  }
  func.func @transform_3(%arg0: i32) -> (i32, i32) {
    %c0_i32 = arith.constant 0 : i32
    %c0_i32_0 = arith.constant 0 : i32
    return %arg0, %c0_i32 : i32, i32
  }
}

module attributes {stable_mosaic.version = 11 : i64} {
  func.func @kernel(%arg0: i32, %arg1: memref<8x1024xf32, #tpu.memory_space<vmem>>, %arg2: memref<256x32xf32, #tpu.memory_space<vmem>>, %arg3: memref<8x128xf32, #tpu.memory_space<vmem>>, %arg4: memref<8x128xf32, #tpu.memory_space<vmem>>) attributes {dimension_semantics = [#tpu.dimension_semantics<parallel>], iteration_bounds = array<i64: 4>, scalar_prefetch = 0 : i64, scratch_operands = 0 : i64, tpu.core_type = #tpu.core_type<tc>, window_params = [{transform_indices = @transform_0, window_bounds = array<i64: 8, 1024>}, {pipeline_mode = #tpu.pipeline_mode<synchronous>, transform_indices = @transform_1, window_bounds = array<i64: 256, 32>}, {transform_indices = @transform_2, window_bounds = array<i64: 8, 128>}, {transform_indices = @transform_3, window_bounds = array<i64: 8, 128>}]} {
    %c0 = arith.constant 0 : index
    %c0_0 = arith.constant 0 : index
    %0 = vector.load %arg2[%c0, %c0_0] : memref<256x32xf32, #tpu.memory_space<vmem>>, vector<256x32xf32>
    %c0_1 = arith.constant 0 : index
    %c0_2 = arith.constant 0 : index
    %1 = vector.load %arg1[%c0_1, %c0_2] : memref<8x1024xf32, #tpu.memory_space<vmem>>, vector<8x256xf32>
    %cst = arith.constant dense<0.000000e+00> : vector<8x32xf32>
    %2 = tpu.matmul %1, %0, %cst {dimension_numbers = #tpu.dot_dimension_numbers<[1], [0], [0], [1], [0, 0, 1, 1], [], []>} : vector<8x256xf32>, vector<256x32xf32>, vector<8x32xf32> -> vector<8x32xf32>
    %c0_3 = arith.constant 0 : index
    %c0_4 = arith.constant 0 : index
    %3 = vector.load %arg3[%c0_3, %c0_4] : memref<8x128xf32, #tpu.memory_space<vmem>>, vector<8x32xf32>
    %4 = arith.addf %2, %3 : vector<8x32xf32>
    %c0_5 = arith.constant 0 : index
    %c0_6 = arith.constant 0 : index
    %5 = vector.load %arg4[%c0_5, %c0_6] : memref<8x128xf32, #tpu.memory_space<vmem>>, vector<8x32xf32>
    tpu.vector_store %arg4[%c0_5, %c0_6], %4 {strides = array<i32>} : memref<8x128xf32, #tpu.memory_space<vmem>>, vector<8x32xf32>,
    %c0_7 = arith.constant 0 : index
    %c256 = arith.constant 256 : index
    %6 = vector.load %arg1[%c0_7, %c256] : memref<8x1024xf32, #tpu.memory_space<vmem>>, vector<8x256xf32>
    %cst_8 = arith.constant dense<0.000000e+00> : vector<8x32xf32>
    %7 = tpu.matmul %6, %0, %cst_8 {dimension_numbers = #tpu.dot_dimension_numbers<[1], [0], [0], [1], [0, 0, 1, 1], [], []>} : vector<8x256xf32>, vector<256x32xf32>, vector<8x32xf32> -> vector<8x32xf32>
    %c0_9 = arith.constant 0 : index
    %c32 = arith.constant 32 : index
    %8 = vector.load %arg3[%c0_9, %c32] : memref<8x128xf32, #tpu.memory_space<vmem>>, vector<8x32xf32>
    %9 = arith.addf %7, %8 : vector<8x32xf32>
    %c0_10 = arith.constant 0 : index
    %c32_11 = arith.constant 32 : index
    %10 = vector.load %arg4[%c0_10, %c32_11] : memref<8x128xf32, #tpu.memory_space<vmem>>, vector<8x32xf32>
    tpu.vector_store %arg4[%c0_10, %c32_11], %9 {strides = array<i32>} : memref<8x128xf32, #tpu.memory_space<vmem>>, vector<8x32xf32>,
    %c0_12 = arith.constant 0 : index
    %c512 = arith.constant 512 : index
    %11 = vector.load %arg1[%c0_12, %c512] : memref<8x1024xf32, #tpu.memory_space<vmem>>, vector<8x256xf32>
    %cst_13 = arith.constant dense<0.000000e+00> : vector<8x32xf32>
    %12 = tpu.matmul %11, %0, %cst_13 {dimension_numbers = #tpu.dot_dimension_numbers<[1], [0], [0], [1], [0, 0, 1, 1], [], []>} : vector<8x256xf32>, vector<256x32xf32>, vector<8x32xf32> -> vector<8x32xf32>
    %c0_14 = arith.constant 0 : index
    %c64 = arith.constant 64 : index
    %13 = vector.load %arg3[%c0_14, %c64] : memref<8x128xf32, #tpu.memory_space<vmem>>, vector<8x32xf32>
    %14 = arith.addf %12, %13 : vector<8x32xf32>
    %c0_15 = arith.constant 0 : index
    %c64_16 = arith.constant 64 : index
    %15 = vector.load %arg4[%c0_15, %c64_16] : memref<8x128xf32, #tpu.memory_space<vmem>>, vector<8x32xf32>
    tpu.vector_store %arg4[%c0_15, %c64_16], %14 {strides = array<i32>} : memref<8x128xf32, #tpu.memory_space<vmem>>, vector<8x32xf32>,
    %c0_17 = arith.constant 0 : index
    %c768 = arith.constant 768 : index
    %16 = vector.load %arg1[%c0_17, %c768] : memref<8x1024xf32, #tpu.memory_space<vmem>>, vector<8x256xf32>
    %cst_18 = arith.constant dense<0.000000e+00> : vector<8x32xf32>
    %17 = tpu.matmul %16, %0, %cst_18 {dimension_numbers = #tpu.dot_dimension_numbers<[1], [0], [0], [1], [0, 0, 1, 1], [], []>} : vector<8x256xf32>, vector<256x32xf32>, vector<8x32xf32> -> vector<8x32xf32>
    %c0_19 = arith.constant 0 : index
    %c96 = arith.constant 96 : index
    %18 = vector.load %arg3[%c0_19, %c96] : memref<8x128xf32, #tpu.memory_space<vmem>>, vector<8x32xf32>
    %19 = arith.addf %17, %18 : vector<8x32xf32>
    %c0_20 = arith.constant 0 : index
    %c96_21 = arith.constant 96 : index
    %20 = vector.load %arg4[%c0_20, %c96_21] : memref<8x128xf32, #tpu.memory_space<vmem>>, vector<8x32xf32>
    tpu.vector_store %arg4[%c0_20, %c96_21], %19 {strides = array<i32>} : memref<8x128xf32, #tpu.memory_space<vmem>>, vector<8x32xf32>,
    return
  }
  func.func @transform_0(%arg0: i32) -> (i32, i32) {
    %c0_i32 = arith.constant 0 : i32
    %c0_i32_0 = arith.constant 0 : i32
    return %arg0, %c0_i32 : i32, i32
  }
  func.func @transform_1(%arg0: i32) -> (i32, i32) {
    %c0_i32 = arith.constant 0 : i32
    %c0_i32_0 = arith.constant 0 : i32
    %c0_i32_1 = arith.constant 0 : i32
    return %c0_i32, %c0_i32_0 : i32, i32
  }
  func.func @transform_2(%arg0: i32) -> (i32, i32) {
    %c2_i32 = arith.constant 2 : i32
    %c0_i32 = arith.constant 0 : i32
    %0 = arith.cmpi eq, %c2_i32, %c0_i32 : i32
    %c1_i32 = arith.constant 1 : i32
    %1 = arith.select %0, %c1_i32, %c2_i32 : i32
    %2 = arith.remsi %arg0, %1 : i32
    %c0_i32_0 = arith.constant 0 : i32
    %3 = arith.cmpi ne, %2, %c0_i32_0 : i32
    %c0_i32_1 = arith.constant 0 : i32
    %4 = arith.cmpi slt, %2, %c0_i32_1 : i32
    %c0_i32_2 = arith.constant 0 : i32
    %5 = arith.cmpi slt, %1, %c0_i32_2 : i32
    %6 = arith.xori %4, %5 : i1
    %7 = arith.andi %6, %3 : i1
    %8 = arith.addi %2, %1 : i32
    %9 = arith.select %7, %8, %2 : i32
    %c0_i32_3 = arith.constant 0 : i32
    %c0_i32_4 = arith.constant 0 : i32
    return %9, %c0_i32_3 : i32, i32
  }
  func.func @transform_3(%arg0: i32) -> (i32, i32) {
    %c0_i32 = arith.constant 0 : i32
    %c0_i32_0 = arith.constant 0 : i32
    return %arg0, %c0_i32 : i32, i32
  }
}

</mosaic_0001>

<llo_original>
// kernel: embeddings_forward.1
$region0: #{embeddings_forward.1}
  #allocation0 [shape = 'u32[]', space=smem, size = 0x4, offset = 0x4, fixed_abs, tag = 'smem constant byte address 0x4 - core index']
  #allocation1 [shape = 'u32[72,128]{1,0:T(1,128)}', space=vmem, size = 0x9000, scoped, tag = 'internal scratch']
  %s0 = inlined_call_operand.vmem [shape: f32[32,1024], index: 0, kind: input, shape index: {}]
  %s1 = inlined_call_operand.vmem [shape: f32[256,32], index: 1, kind: input, shape index: {}]
  %s2 = inlined_call_operand.vmem [shape: f32[16,128], index: 2, kind: input, shape index: {}]
  %s3 = inlined_call_operand.vmem [shape: f32[32,128], index: 3, kind: output, shape index: {}]
  %s4 = sld [smem:[#allocation0]]
  $region45: #{embeddings_forward.1} parent=0
    _
  %s6 = ssub.s32 1, %s4
  %s7 = scalar_select 0, %s6, %s4
  loop: start=0, step=1, limit=6
  $region2: #{embeddings_forward.1} parent=0 // loop_pre_header
    _
  $region3: #{embeddings_forward.1} parent=0 // loop_header
    %s9 = sphi 0, %s13
    %p10 = scmp.ge.s32.totalorder %s9, 6
    %s19 = sphi 0, %s21
    %s22 = sphi 0, %s19
    %s23 = sphi 0, %s22
    %s39 = sphi 0, %s23
    %s43 = sphi 0, %s43
    %s45 = sphi 0, %s43
    %s46 = sphi 0, %s45
    %s60 = sphi 0, %s46
    %s90 = sphi 0, %s92
    %s93 = sphi 0, %s90
    %s94 = sphi 0, %s93
    %s110 = sphi 0, %s94
    %s116 = sphi 0, %s118
    %s119 = sphi 0, %s116
    %s120 = sphi 0, %s119
    %s136 = sphi 0, %s120
  $region4: #{embeddings_forward.1} parent=0 // loop_header_branch
    %12 = sbr.rel (%p10) target = $region8
  $region5: #{embeddings_forward.1} parent=0 // loop_body
    %s14 = ssub.s32 %s9, 1
    %s15 = ssub.s32 %s9, 2
    %s16 = sadd.s32 %s9, 1
    %s17 = ssub.s32 %s9, %s16
    %p18 = scmp.eq.s32.totalorder %s17, 0
    %s20 = sadd.s32 %s19, 1
    %s21 = scalar_select %p18, %s19, %s20
    %p24 = pneg %p18
    %p25 = scmp.eq.s32.totalorder %s9, 3
    %p26 = por %p24, %p25
    %p27 = scmp.ne.s32.totalorder %s19, %s22
    %p28 = scmp.eq.s32.totalorder %s9, 0
    %p29 = por %p27, %p28
    %p30 = scmp.ne.s32.totalorder %s19, %s22
    %p31 = scmp.eq.s32.totalorder %s14, 3
    %p32 = por %p30, %p31
    %p33 = scmp.ne.s32.totalorder %s22, %s23
    %p34 = scmp.eq.s32.totalorder %s14, 0
    %p35 = por %p33, %p34
    %p36 = scmp.ne.s32.totalorder %s22, %s23
    %p37 = scmp.eq.s32.totalorder %s15, 3
    %p38 = por %p36, %p37
    %p40 = scmp.ne.s32.totalorder %s23, %s39
    %p41 = scmp.eq.s32.totalorder %s15, 0
    %p42 = por %p40, %p41
    %s44 = sadd.s32 %s43, 1
    %p47 = scmp.eq.s32.totalorder %s9, 3
    %p48 = scmp.ne.s32.totalorder %s43, %s45
    %p49 = scmp.eq.s32.totalorder %s9, 0
    %p50 = por %p48, %p49
    %p51 = scmp.ne.s32.totalorder %s43, %s45
    %p52 = scmp.eq.s32.totalorder %s14, 3
    %p53 = por %p51, %p52
    %p54 = scmp.ne.s32.totalorder %s45, %s46
    %p55 = scmp.eq.s32.totalorder %s14, 0
    %p56 = por %p54, %p55
    %p57 = scmp.ne.s32.totalorder %s45, %s46
    %p58 = scmp.eq.s32.totalorder %s15, 3
    %p59 = por %p57, %p58
    %p61 = scmp.ne.s32.totalorder %s46, %s60
    %p62 = scmp.eq.s32.totalorder %s15, 0
    %p63 = por %p61, %p62
    %p64 = scmp.lt.s32.totalorder %s9, 0
    %s65 = ssub.s32 0, %s9
    %s66 = scalar_select %p64, %s65, %s9
    %s67 = sand.u32 %s66, 1
    %s68 = ssub.s32 0, %s67
    %s69 = scalar_select %p64, %s68, %s67
    %p70 = scmp.ne.s32.totalorder %s69, 0
    %p71 = scmp.lt.s32.totalorder %s69, 0
    %p72 = pnand %p71, %p70
    %p73 = pneg %p72
    %s74 = sadd.s32 %s69, 2
    %s75 = scalar_select %p73, %s74, %s69
    %p76 = scmp.lt.s32.totalorder %s16, 0
    %s77 = ssub.s32 0, %s16
    %s78 = scalar_select %p76, %s77, %s16
    %s79 = sand.u32 %s78, 1
    %s80 = ssub.s32 0, %s79
    %s81 = scalar_select %p76, %s80, %s79
    %p82 = scmp.ne.s32.totalorder %s81, 0
    %p83 = scmp.lt.s32.totalorder %s81, 0
    %p84 = pnand %p83, %p82
    %p85 = pneg %p84
    %s86 = sadd.s32 %s81, 2
    %s87 = scalar_select %p85, %s86, %s81
    %s88 = ssub.s32 %s75, %s87
    %p89 = scmp.eq.s32.totalorder %s88, 0
    %s91 = sadd.s32 %s90, 1
    %s92 = scalar_select %p89, %s90, %s91
    %p95 = pneg %p89
    %p96 = scmp.eq.s32.totalorder %s9, 3
    %p97 = por %p95, %p96
    %p98 = scmp.ne.s32.totalorder %s90, %s93
    %p99 = scmp.eq.s32.totalorder %s9, 0
    %p100 = por %p98, %p99
    %p101 = scmp.ne.s32.totalorder %s90, %s93
    %p102 = scmp.eq.s32.totalorder %s14, 3
    %p103 = por %p101, %p102
    %p104 = scmp.ne.s32.totalorder %s93, %s94
    %p105 = scmp.eq.s32.totalorder %s14, 0
    %p106 = por %p104, %p105
    %p107 = scmp.ne.s32.totalorder %s93, %s94
    %p108 = scmp.eq.s32.totalorder %s15, 3
    %p109 = por %p107, %p108
    %p111 = scmp.ne.s32.totalorder %s94, %s110
    %p112 = scmp.eq.s32.totalorder %s15, 0
    %p113 = por %p111, %p112
    %s114 = ssub.s32 %s9, %s16
    %p115 = scmp.eq.s32.totalorder %s114, 0
    %s117 = sadd.s32 %s116, 1
    %s118 = scalar_select %p115, %s116, %s117
    %p121 = pneg %p115
    %p122 = scmp.eq.s32.totalorder %s9, 3
    %p123 = por %p121, %p122
    %p124 = scmp.ne.s32.totalorder %s116, %s119
    %p125 = scmp.eq.s32.totalorder %s9, 0
    %p126 = por %p124, %p125
    %p127 = scmp.ne.s32.totalorder %s116, %s119
    %p128 = scmp.eq.s32.totalorder %s14, 3
    %p129 = por %p127, %p128
    %p130 = scmp.ne.s32.totalorder %s119, %s120
    %p131 = scmp.eq.s32.totalorder %s14, 0
    %p132 = por %p130, %p131
    %p133 = scmp.ne.s32.totalorder %s119, %s120
    %p134 = scmp.eq.s32.totalorder %s15, 3
    %p135 = por %p133, %p134
    %p137 = scmp.ne.s32.totalorder %s120, %s136
    %p138 = scmp.eq.s32.totalorder %s15, 0
    %p139 = por %p137, %p138
    %p140 = scmp.le.s32.totalorder 1, %s9
    %p141 = scmp.lt.s32.totalorder %s9, 5
    %p142 = pnand %p140, %p141
    %p143 = pneg %p142
    // Predicated region
    $region9: #{embeddings_forward.1} parent=5 // pred_check
      _
    $region10: #{embeddings_forward.1} parent=5 // pred_check_branch
      %145 = sbr.rel (%p142) target = $region12
    $region11: #{embeddings_forward.1} parent=5 // pred_region
      %s146 = ssub.s32 %s9, 1
      // Predicated region
      $region13: #{embeddings_forward.1} parent=11 // pred_check
        %p147 = pneg %p56
      $region14: #{embeddings_forward.1} parent=11 // pred_check_branch
        %149 = sbr.rel (%p147) target = $region16
      $region15: #{embeddings_forward.1} parent=11 // pred_region
        _
      $region16: #{embeddings_forward.1} parent=11 // pred_fallthru
        _
    $region12: #{embeddings_forward.1} parent=5 // pred_fallthru
      _
    %p150 = scmp.lt.s32.totalorder %s9, 4
    // Predicated region
    $region17: #{embeddings_forward.1} parent=5 // pred_check
      %p151 = pneg %p150
    $region18: #{embeddings_forward.1} parent=5 // pred_check_branch
      %153 = sbr.rel (%p151) target = $region20
    $region19: #{embeddings_forward.1} parent=5 // pred_region
      // Predicated region
      $region21: #{embeddings_forward.1} parent=19 // pred_check
        %p154 = pneg %p29
      $region22: #{embeddings_forward.1} parent=19 // pred_check_branch
        %156 = sbr.rel (%p154) target = $region24
      $region23: #{embeddings_forward.1} parent=19 // pred_region
        %p157 = scmp.lt.s32.totalorder %s9, 3
        %s158 = scalar_select %p157, %s9, 3
        %s159 = smul.addr %s158, 8
        %s160 = smul.addr %s159, 8
        %s161 = scalar_lea.vmem %s0, %s160
      $region24: #{embeddings_forward.1} parent=19 // pred_fallthru
        _
      // Predicated region
      $region25: #{embeddings_forward.1} parent=19 // pred_check
        %p162 = pneg %p100
      $region26: #{embeddings_forward.1} parent=19 // pred_check_branch
        %164 = sbr.rel (%p162) target = $region28
      $region27: #{embeddings_forward.1} parent=19 // pred_region
        %p165 = scmp.lt.s32.totalorder %s9, 0
        %s166 = ssub.s32 0, %s9
        %s167 = scalar_select %p165, %s166, %s9
        %s168 = sand.u32 %s167, 1
        %s169 = ssub.s32 0, %s168
        %s170 = scalar_select %p165, %s169, %s168
        %p171 = scmp.ne.s32.totalorder %s170, 0
        %p172 = scmp.lt.s32.totalorder %s170, 0
        %p173 = pnand %p172, %p171
        %p174 = pneg %p173
        %s175 = sadd.s32 %s170, 2
        %s176 = scalar_select %p174, %s175, %s170
        %p177 = scmp.lt.s32.totalorder %s176, 1
        %s178 = scalar_select %p177, %s176, 1
        %s179 = smul.addr %s178, 8
        %s180 = scalar_lea.vmem %s2, %s179
        %p181 = scmp.lt.s32.totalorder %s9, 0
        %s182 = ssub.s32 0, %s9
        %s183 = scalar_select %p181, %s182, %s9
        %s184 = sand.u32 %s183, 1
        %s185 = ssub.s32 0, %s184
        %s186 = scalar_select %p181, %s185, %s184
        %p187 = scmp.ne.s32.totalorder %s186, 0
        %p188 = scmp.lt.s32.totalorder %s186, 0
        %p189 = pnand %p188, %p187
        %p190 = pneg %p189
        %s191 = sadd.s32 %s186, 2
        %s192 = scalar_select %p190, %s191, %s186
      $region28: #{embeddings_forward.1} parent=19 // pred_fallthru
        _
    $region20: #{embeddings_forward.1} parent=5 // pred_fallthru
      _
    %p193 = scmp.le.s32.totalorder 1, %s9
    %p194 = scmp.lt.s32.totalorder %s9, 5
    %p195 = pnand %p193, %p194
    %p196 = pneg %p195
    // Predicated region
    $region29: #{embeddings_forward.1} parent=5 // pred_check
      _
    $region30: #{embeddings_forward.1} parent=5 // pred_check_branch
      %198 = sbr.rel (%p195) target = $region32
    $region31: #{embeddings_forward.1} parent=5 // pred_region
      %s199 = ssub.s32 %s9, 1
      %p200 = scmp.lt.s32.totalorder %s14, 3
      %s201 = scalar_select %p200, %s14, 3
      %s202 = smul.addr %s201, 8
      %s203 = smul.addr %s202, 8
      %s204 = scalar_lea.vmem %s0, %s203
      %p205 = pneg %p35
      %p206 = pneg %p32
      %p207 = pneg %p56
      %p208 = pneg %p53
      %p209 = scmp.lt.s32.totalorder %s14, 0
      %s210 = ssub.s32 0, %s14
      %s211 = scalar_select %p209, %s210, %s14
      %s212 = sand.u32 %s211, 1
      %s213 = ssub.s32 0, %s212
      %s214 = scalar_select %p209, %s213, %s212
      %p215 = scmp.ne.s32.totalorder %s214, 0
      %p216 = scmp.lt.s32.totalorder %s214, 0
      %p217 = pnand %p216, %p215
      %p218 = pneg %p217
      %s219 = sadd.s32 %s214, 2
      %s220 = scalar_select %p218, %s219, %s214
      %p221 = scmp.lt.s32.totalorder %s220, 1
      %s222 = scalar_select %p221, %s220, 1
      %s223 = smul.addr %s222, 8
      %s224 = scalar_lea.vmem %s2, %s223
      %p225 = pneg %p106
      %p226 = pneg %p103
      %p227 = pneg %p132
      %p228 = pneg %p129
      %p229 = scmp.lt.s32.totalorder %s14, 3
      %s230 = scalar_select %p229, %s14, 3
      %s231 = smul.addr %s230, 8
      %s232 = scalar_lea.vmem %s3, %s231
      %p233 = scmp.lt.s32.totalorder %s14, 3
      %s234 = scalar_select %p233, %s14, 3
      %s235 = smul.addr %s234, 8
      %s236 = smul.addr %s235, 8
      %s237 = scalar_lea.vmem %s0, %s236
      %p238 = scmp.lt.s32.totalorder %s14, 0
      %s239 = ssub.s32 0, %s14
      %s240 = scalar_select %p238, %s239, %s14
      %s241 = sand.u32 %s240, 1
      %s242 = ssub.s32 0, %s241
      %s243 = scalar_select %p238, %s242, %s241
      %p244 = scmp.ne.s32.totalorder %s243, 0
      %p245 = scmp.lt.s32.totalorder %s243, 0
      %p246 = pnand %p245, %p244
      %p247 = pneg %p246
      %s248 = sadd.s32 %s243, 2
      %s249 = scalar_select %p247, %s248, %s243
      %p250 = scmp.lt.s32.totalorder %s249, 1
      %s251 = scalar_select %p250, %s249, 1
      %s252 = smul.addr %s251, 8
      %s253 = scalar_lea.vmem %s2, %s252
      %p254 = scmp.lt.s32.totalorder %s14, 0
      %s255 = ssub.s32 0, %s14
      %s256 = scalar_select %p254, %s255, %s14
      %s257 = sand.u32 %s256, 1
      %s258 = ssub.s32 0, %s257
      %s259 = scalar_select %p254, %s258, %s257
      %p260 = scmp.ne.s32.totalorder %s259, 0
      %p261 = scmp.lt.s32.totalorder %s259, 0
      %p262 = pnand %p261, %p260
      %p263 = pneg %p262
      %s264 = sadd.s32 %s259, 2
      %s265 = scalar_select %p263, %s264, %s259
      %p266 = scmp.lt.s32.totalorder %s14, 3
      %s267 = scalar_select %p266, %s14, 3
      %s268 = smul.addr %s267, 8
      %s269 = scalar_lea.vmem %s3, %s268
      %v270 = vld [vmem:[%s1] sm:$0xff]
      %v271 = vld [vmem:[%s1 + $0x8] sm:$0xff]
      %v272 = vld [vmem:[%s1 + $0x10] sm:$0xff]
      %v273 = vld [vmem:[%s1 + $0x18] sm:$0xff]
      %v274 = vld [vmem:[%s1 + $0x20] sm:$0xff]
      %v275 = vld [vmem:[%s1 + $0x28] sm:$0xff]
      %v276 = vld [vmem:[%s1 + $0x30] sm:$0xff]
      %v277 = vld [vmem:[%s1 + $0x38] sm:$0xff]
      %v278 = vld [vmem:[%s1 + $0x40] sm:$0xff]
      %v279 = vld [vmem:[%s1 + $0x48] sm:$0xff]
      %v280 = vld [vmem:[%s1 + $0x50] sm:$0xff]
      %v281 = vld [vmem:[%s1 + $0x58] sm:$0xff]
      %v282 = vld [vmem:[%s1 + $0x60] sm:$0xff]
      %v283 = vld [vmem:[%s1 + $0x68] sm:$0xff]
      %v284 = vld [vmem:[%s1 + $0x70] sm:$0xff]
      %v285 = vld [vmem:[%s1 + $0x78] sm:$0xff]
      %v286 = vld [vmem:[%s1 + $0x80] sm:$0xff]
      %v287 = vld [vmem:[%s1 + $0x88] sm:$0xff]
      %v288 = vld [vmem:[%s1 + $0x90] sm:$0xff]
      %v289 = vld [vmem:[%s1 + $0x98] sm:$0xff]
      %v290 = vld [vmem:[%s1 + $0xa0] sm:$0xff]
      %v291 = vld [vmem:[%s1 + $0xa8] sm:$0xff]
      %v292 = vld [vmem:[%s1 + $0xb0] sm:$0xff]
      %v293 = vld [vmem:[%s1 + $0xb8] sm:$0xff]
      %v294 = vld [vmem:[%s1 + $0xc0] sm:$0xff]
      %v295 = vld [vmem:[%s1 + $0xc8] sm:$0xff]
      %v296 = vld [vmem:[%s1 + $0xd0] sm:$0xff]
      %v297 = vld [vmem:[%s1 + $0xd8] sm:$0xff]
      %v298 = vld [vmem:[%s1 + $0xe0] sm:$0xff]
      %v299 = vld [vmem:[%s1 + $0xe8] sm:$0xff]
      %v300 = vld [vmem:[%s1 + $0xf0] sm:$0xff]
      %v301 = vld [vmem:[%s1 + $0xf8] sm:$0xff]
      %v302 = vld [vmem:[%s237] sm:$0xff]
      %v303 = vld [vmem:[%s237 + $0x8] sm:$0xff]
      %v304 = vld [vmem:[%s253] sm:$0xff]
      %305 = vmatpush.msra.mxu0 %v285
      %306 = vmatpush.msra.mxu0 %v284
      %307 = vmatpush.msra.mxu0 %v283
      %308 = vmatpush.msra.mxu0 %v282
      %309 = vmatpush.msra.mxu0 %v281
      %310 = vmatpush.msra.mxu0 %v280
      %311 = vmatpush.msra.mxu0 %v279
      %312 = vmatpush.msra.mxu0 %v278
      %313 = vmatpush.msra.mxu0 %v277
      %314 = vmatpush.msra.mxu0 %v276
      %315 = vmatpush.msra.mxu0 %v275
      %316 = vmatpush.msra.mxu0 %v274
      %317 = vmatpush.msra.mxu0 %v273
      %318 = vmatpush.msra.mxu0 %v272
      %319 = vmatpush.msra.mxu0 %v271
      %320 = vmatpush.msra.mxu0 %v270
      %321 = vmatmul.f32.gmra.mxu0 %v302
      %v322 = vpop.f32.mrf.mxu0
      %v323 = vadd.f32 %v304, %v322
      %324 = vdwg.mxu0
      %325 = vmatpush.msra.mxu0 %v301
      %326 = vmatpush.msra.mxu0 %v300
      %327 = vmatpush.msra.mxu0 %v299
      %328 = vmatpush.msra.mxu0 %v298
      %329 = vmatpush.msra.mxu0 %v297
      %330 = vmatpush.msra.mxu0 %v296
      %331 = vmatpush.msra.mxu0 %v295
      %332 = vmatpush.msra.mxu0 %v294
      %333 = vmatpush.msra.mxu0 %v293
      %334 = vmatpush.msra.mxu0 %v292
      %335 = vmatpush.msra.mxu0 %v291
      %336 = vmatpush.msra.mxu0 %v290
      %337 = vmatpush.msra.mxu0 %v289
      %338 = vmatpush.msra.mxu0 %v288
      %339 = vmatpush.msra.mxu0 %v287
      %340 = vmatpush.msra.mxu0 %v286
      %341 = vmatmul.f32.gmra.mxu0 %v303
      %v342 = vpop.f32.mrf.mxu0
      %v343 = vadd.f32 %v323, %v342
      %344 = vdwg.mxu0
      %vm345 = vcmask 261120
      %346 = vst.msk [vmem:[%s269] sm:$0xff] %vm345, %v343
      %v347 = vld [vmem:[%s237 + $0x10] sm:$0xff]
      %v348 = vld [vmem:[%s237 + $0x18] sm:$0xff]
      %v349 = vld [vmem:[%s253] sm:$0xff]
      %351 = vrot.lane.b32.xlu0 %v349, 96
      %v352 = vpop.permute.xlu0 %351
      %354 = vmatpush.msra.mxu0 %v285
      %355 = vmatpush.msra.mxu0 %v284
      %356 = vmatpush.msra.mxu0 %v283
      %357 = vmatpush.msra.mxu0 %v282
      %358 = vmatpush.msra.mxu0 %v281
      %359 = vmatpush.msra.mxu0 %v280
      %360 = vmatpush.msra.mxu0 %v279
      %361 = vmatpush.msra.mxu0 %v278
      %362 = vmatpush.msra.mxu0 %v277
      %363 = vmatpush.msra.mxu0 %v276
      %364 = vmatpush.msra.mxu0 %v275
      %365 = vmatpush.msra.mxu0 %v274
      %366 = vmatpush.msra.mxu0 %v273
      %367 = vmatpush.msra.mxu0 %v272
      %368 = vmatpush.msra.mxu0 %v271
      %369 = vmatpush.msra.mxu0 %v270
      %370 = vmatmul.f32.gmra.mxu0 %v347
      %v371 = vpop.f32.mrf.mxu0
      %v372 = vadd.f32 %v352, %v371
      %373 = vdwg.mxu0
      %374 = vmatpush.msra.mxu0 %v301
      %375 = vmatpush.msra.mxu0 %v300
      %376 = vmatpush.msra.mxu0 %v299
      %377 = vmatpush.msra.mxu0 %v298
      %378 = vmatpush.msra.mxu0 %v297
      %379 = vmatpush.msra.mxu0 %v296
      %380 = vmatpush.msra.mxu0 %v295
      %381 = vmatpush.msra.mxu0 %v294
      %382 = vmatpush.msra.mxu0 %v293
      %383 = vmatpush.msra.mxu0 %v292
      %384 = vmatpush.msra.mxu0 %v291
      %385 = vmatpush.msra.mxu0 %v290
      %386 = vmatpush.msra.mxu0 %v289
      %387 = vmatpush.msra.mxu0 %v288
      %388 = vmatpush.msra.mxu0 %v287
      %389 = vmatpush.msra.mxu0 %v286
      %390 = vmatmul.f32.gmra.mxu0 %v348
      %v391 = vpop.f32.mrf.mxu0
      %v392 = vadd.f32 %v372, %v391
      %393 = vdwg.mxu0
      %395 = vrot.lane.b32.xlu0 %v392, 32
      %v396 = vpop.permute.xlu0 %395
      %vm398 = vcmask 523520
      %399 = vst.msk [vmem:[%s269] sm:$0xff] %vm398, %v396
      %v400 = vld [vmem:[%s237 + $0x20] sm:$0xff]
      %v401 = vld [vmem:[%s237 + $0x28] sm:$0xff]
      %v402 = vld [vmem:[%s253] sm:$0xff]
      %404 = vrot.lane.b32.xlu0 %v402, 64
      %v405 = vpop.permute.xlu0 %404
      %407 = vmatpush.msra.mxu0 %v285
      %408 = vmatpush.msra.mxu0 %v284
      %409 = vmatpush.msra.mxu0 %v283
      %410 = vmatpush.msra.mxu0 %v282
      %411 = vmatpush.msra.mxu0 %v281
      %412 = vmatpush.msra.mxu0 %v280
      %413 = vmatpush.msra.mxu0 %v279
      %414 = vmatpush.msra.mxu0 %v278
      %415 = vmatpush.msra.mxu0 %v277
      %416 = vmatpush.msra.mxu0 %v276
      %417 = vmatpush.msra.mxu0 %v275
      %418 = vmatpush.msra.mxu0 %v274
      %419 = vmatpush.msra.mxu0 %v273
      %420 = vmatpush.msra.mxu0 %v272
      %421 = vmatpush.msra.mxu0 %v271
      %422 = vmatpush.msra.mxu0 %v270
      %423 = vmatmul.f32.gmra.mxu0 %v400
      %v424 = vpop.f32.mrf.mxu0
      %v425 = vadd.f32 %v405, %v424
      %426 = vdwg.mxu0
      %427 = vmatpush.msra.mxu0 %v301
      %428 = vmatpush.msra.mxu0 %v300
      %429 = vmatpush.msra.mxu0 %v299
      %430 = vmatpush.msra.mxu0 %v298
      %431 = vmatpush.msra.mxu0 %v297
      %432 = vmatpush.msra.mxu0 %v296
      %433 = vmatpush.msra.mxu0 %v295
      %434 = vmatpush.msra.mxu0 %v294
      %435 = vmatpush.msra.mxu0 %v293
      %436 = vmatpush.msra.mxu0 %v292
      %437 = vmatpush.msra.mxu0 %v291
      %438 = vmatpush.msra.mxu0 %v290
      %439 = vmatpush.msra.mxu0 %v289
      %440 = vmatpush.msra.mxu0 %v288
      %441 = vmatpush.msra.mxu0 %v287
      %442 = vmatpush.msra.mxu0 %v286
      %443 = vmatmul.f32.gmra.mxu0 %v401
      %v444 = vpop.f32.mrf.mxu0
      %v445 = vadd.f32 %v425, %v444
      %446 = vdwg.mxu0
      %448 = vrot.lane.b32.xlu0 %v445, 64
      %v449 = vpop.permute.xlu0 %448
      %vm451 = vcmask 785920
      %452 = vst.msk [vmem:[%s269] sm:$0xff] %vm451, %v449
      %v453 = vld [vmem:[%s237 + $0x30] sm:$0xff]
      %v454 = vld [vmem:[%s237 + $0x38] sm:$0xff]
      %v455 = vld [vmem:[%s253] sm:$0xff]
      %457 = vrot.lane.b32.xlu0 %v455, 32
      %v458 = vpop.permute.xlu0 %457
      %460 = vmatpush.msra.mxu0 %v285
      %461 = vmatpush.msra.mxu0 %v284
      %462 = vmatpush.msra.mxu0 %v283
      %463 = vmatpush.msra.mxu0 %v282
      %464 = vmatpush.msra.mxu0 %v281
      %465 = vmatpush.msra.mxu0 %v280
      %466 = vmatpush.msra.mxu0 %v279
      %467 = vmatpush.msra.mxu0 %v278
      %468 = vmatpush.msra.mxu0 %v277
      %469 = vmatpush.msra.mxu0 %v276
      %470 = vmatpush.msra.mxu0 %v275
      %471 = vmatpush.msra.mxu0 %v274
      %472 = vmatpush.msra.mxu0 %v273
      %473 = vmatpush.msra.mxu0 %v272
      %474 = vmatpush.msra.mxu0 %v271
      %475 = vmatpush.msra.mxu0 %v270
      %476 = vmatmul.f32.gmra.mxu0 %v453
      %v477 = vpop.f32.mrf.mxu0
      %v478 = vadd.f32 %v458, %v477
      %479 = vdwg.mxu0
      %480 = vmatpush.msra.mxu0 %v301
      %481 = vmatpush.msra.mxu0 %v300
      %482 = vmatpush.msra.mxu0 %v299
      %483 = vmatpush.msra.mxu0 %v298
      %484 = vmatpush.msra.mxu0 %v297
      %485 = vmatpush.msra.mxu0 %v296
      %486 = vmatpush.msra.mxu0 %v295
      %487 = vmatpush.msra.mxu0 %v294
      %488 = vmatpush.msra.mxu0 %v293
      %489 = vmatpush.msra.mxu0 %v292
      %490 = vmatpush.msra.mxu0 %v291
      %491 = vmatpush.msra.mxu0 %v290
      %492 = vmatpush.msra.mxu0 %v289
      %493 = vmatpush.msra.mxu0 %v288
      %494 = vmatpush.msra.mxu0 %v287
      %495 = vmatpush.msra.mxu0 %v286
      %496 = vmatmul.f32.gmra.mxu0 %v454
      %v497 = vpop.f32.mrf.mxu0
      %v498 = vadd.f32 %v478, %v497
      %499 = vdwg.mxu0
      %501 = vrot.lane.b32.xlu0 %v498, 96
      %v502 = vpop.permute.xlu0 %501
      %vm504 = vcmask 1048320
      %505 = vst.msk [vmem:[%s269] sm:$0xff] %vm504, %v502
      %p506 = scmp.lt.s32.totalorder %s14, 3
      %s507 = scalar_select %p506, %s14, 3
      %s508 = smul.addr %s507, 8
      %s509 = scalar_lea.vmem %s3, %s508
      // Predicated region
      $region33: #{embeddings_forward.1} parent=31 // pred_check
        %p510 = pneg %p129
      $region34: #{embeddings_forward.1} parent=31 // pred_check_branch
        %512 = sbr.rel (%p510) target = $region36
      $region35: #{embeddings_forward.1} parent=31 // pred_region
        _
      $region36: #{embeddings_forward.1} parent=31 // pred_fallthru
        _
    $region32: #{embeddings_forward.1} parent=5 // pred_fallthru
      _
    %p513 = scmp.le.s32.totalorder 2, %s9
    // Predicated region
    $region37: #{embeddings_forward.1} parent=5 // pred_check
      %p514 = pneg %p513
    $region38: #{embeddings_forward.1} parent=5 // pred_check_branch
      %516 = sbr.rel (%p514) target = $region40
    $region39: #{embeddings_forward.1} parent=5 // pred_region
      %s517 = ssub.s32 %s9, 2
      // Predicated region
      $region41: #{embeddings_forward.1} parent=39 // pred_check
        %p518 = pneg %p135
      $region42: #{embeddings_forward.1} parent=39 // pred_check_branch
        %520 = sbr.rel (%p518) target = $region44
      $region43: #{embeddings_forward.1} parent=39 // pred_region
        %p521 = scmp.lt.s32.totalorder %s15, 3
        %s522 = scalar_select %p521, %s15, 3
        %s523 = smul.addr %s522, 8
        %s524 = scalar_lea.vmem %s3, %s523
      $region44: #{embeddings_forward.1} parent=39 // pred_fallthru
        _
    $region40: #{embeddings_forward.1} parent=5 // pred_fallthru
      _
  $region6: #{embeddings_forward.1} parent=0 // loop_footer
    %s13 = sadd.s32 1, %s9
  $region7: #{embeddings_forward.1} parent=0 // loop_footer_branch
    %8 = sbr.rel target = $region3
  $region8: #{embeddings_forward.1} parent=0 // loop_exit
    _

// kernel: embeddings_forward.1
$region0: #{embeddings_forward.1}
  #allocation0 [shape = 'u32[]', space=smem, size = 0x4, offset = 0x4, fixed_abs, tag = 'smem constant byte address 0x4 - core index']
  #allocation1 [shape = 'u32[72,128]{1,0:T(1,128)}', space=vmem, size = 0x9000, scoped, tag = 'internal scratch']
  %s0 = inlined_call_operand.vmem [shape: f32[32,1024], index: 0, kind: input, shape index: {}]
  %s1 = inlined_call_operand.vmem [shape: f32[256,32], index: 1, kind: input, shape index: {}]
  %s2 = inlined_call_operand.vmem [shape: f32[16,128], index: 2, kind: input, shape index: {}]
  %s3 = inlined_call_operand.vmem [shape: f32[32,128], index: 3, kind: output, shape index: {}]
  %s4 = sld [smem:[#allocation0]]
  $region45: #{embeddings_forward.1} parent=0
    _
  %s6 = ssub.s32 1, %s4
  %s7 = scalar_select 0, %s6, %s4
  loop: start=0, step=1, limit=6
  $region2: #{embeddings_forward.1} parent=0 // loop_pre_header
    _
  $region3: #{embeddings_forward.1} parent=0 // loop_header
    %s9 = sphi 0, %s13
    %p10 = scmp.ge.s32.totalorder %s9, 6
    %s19 = sphi 0, %s21
    %s22 = sphi 0, %s19
    %s23 = sphi 0, %s22
    %s39 = sphi 0, %s23
    %s43 = sphi 0, %s43
    %s45 = sphi 0, %s43
    %s46 = sphi 0, %s45
    %s60 = sphi 0, %s46
    %s90 = sphi 0, %s92
    %s93 = sphi 0, %s90
    %s94 = sphi 0, %s93
    %s110 = sphi 0, %s94
    %s116 = sphi 0, %s118
    %s119 = sphi 0, %s116
    %s120 = sphi 0, %s119
    %s136 = sphi 0, %s120
  $region4: #{embeddings_forward.1} parent=0 // loop_header_branch
    %12 = sbr.rel (%p10) target = $region8
  $region5: #{embeddings_forward.1} parent=0 // loop_body
    %s14 = ssub.s32 %s9, 1
    %s15 = ssub.s32 %s9, 2
    %s16 = sadd.s32 %s9, 1
    %s17 = ssub.s32 %s9, %s16
    %p18 = scmp.eq.s32.totalorder %s17, 0
    %s20 = sadd.s32 %s19, 1
    %s21 = scalar_select %p18, %s19, %s20
    %p24 = pneg %p18
    %p25 = scmp.eq.s32.totalorder %s9, 3
    %p26 = por %p24, %p25
    %p27 = scmp.ne.s32.totalorder %s19, %s22
    %p28 = scmp.eq.s32.totalorder %s9, 0
    %p29 = por %p27, %p28
    %p30 = scmp.ne.s32.totalorder %s19, %s22
    %p31 = scmp.eq.s32.totalorder %s14, 3
    %p32 = por %p30, %p31
    %p33 = scmp.ne.s32.totalorder %s22, %s23
    %p34 = scmp.eq.s32.totalorder %s14, 0
    %p35 = por %p33, %p34
    %p36 = scmp.ne.s32.totalorder %s22, %s23
    %p37 = scmp.eq.s32.totalorder %s15, 3
    %p38 = por %p36, %p37
    %p40 = scmp.ne.s32.totalorder %s23, %s39
    %p41 = scmp.eq.s32.totalorder %s15, 0
    %p42 = por %p40, %p41
    %s44 = sadd.s32 %s43, 1
    %p47 = scmp.eq.s32.totalorder %s9, 3
    %p48 = scmp.ne.s32.totalorder %s43, %s45
    %p49 = scmp.eq.s32.totalorder %s9, 0
    %p50 = por %p48, %p49
    %p51 = scmp.ne.s32.totalorder %s43, %s45
    %p52 = scmp.eq.s32.totalorder %s14, 3
    %p53 = por %p51, %p52
    %p54 = scmp.ne.s32.totalorder %s45, %s46
    %p55 = scmp.eq.s32.totalorder %s14, 0
    %p56 = por %p54, %p55
    %p57 = scmp.ne.s32.totalorder %s45, %s46
    %p58 = scmp.eq.s32.totalorder %s15, 3
    %p59 = por %p57, %p58
    %p61 = scmp.ne.s32.totalorder %s46, %s60
    %p62 = scmp.eq.s32.totalorder %s15, 0
    %p63 = por %p61, %p62
    %p64 = scmp.lt.s32.totalorder %s9, 0
    %s65 = ssub.s32 0, %s9
    %s66 = scalar_select %p64, %s65, %s9
    %s67 = sand.u32 %s66, 1
    %s68 = ssub.s32 0, %s67
    %s69 = scalar_select %p64, %s68, %s67
    %p70 = scmp.ne.s32.totalorder %s69, 0
    %p71 = scmp.lt.s32.totalorder %s69, 0
    %p72 = pnand %p71, %p70
    %p73 = pneg %p72
    %s74 = sadd.s32 %s69, 2
    %s75 = scalar_select %p73, %s74, %s69
    %p76 = scmp.lt.s32.totalorder %s16, 0
    %s77 = ssub.s32 0, %s16
    %s78 = scalar_select %p76, %s77, %s16
    %s79 = sand.u32 %s78, 1
    %s80 = ssub.s32 0, %s79
    %s81 = scalar_select %p76, %s80, %s79
    %p82 = scmp.ne.s32.totalorder %s81, 0
    %p83 = scmp.lt.s32.totalorder %s81, 0
    %p84 = pnand %p83, %p82
    %p85 = pneg %p84
    %s86 = sadd.s32 %s81, 2
    %s87 = scalar_select %p85, %s86, %s81
    %s88 = ssub.s32 %s75, %s87
    %p89 = scmp.eq.s32.totalorder %s88, 0
    %s91 = sadd.s32 %s90, 1
    %s92 = scalar_select %p89, %s90, %s91
    %p95 = pneg %p89
    %p96 = scmp.eq.s32.totalorder %s9, 3
    %p97 = por %p95, %p96
    %p98 = scmp.ne.s32.totalorder %s90, %s93
    %p99 = scmp.eq.s32.totalorder %s9, 0
    %p100 = por %p98, %p99
    %p101 = scmp.ne.s32.totalorder %s90, %s93
    %p102 = scmp.eq.s32.totalorder %s14, 3
    %p103 = por %p101, %p102
    %p104 = scmp.ne.s32.totalorder %s93, %s94
    %p105 = scmp.eq.s32.totalorder %s14, 0
    %p106 = por %p104, %p105
    %p107 = scmp.ne.s32.totalorder %s93, %s94
    %p108 = scmp.eq.s32.totalorder %s15, 3
    %p109 = por %p107, %p108
    %p111 = scmp.ne.s32.totalorder %s94, %s110
    %p112 = scmp.eq.s32.totalorder %s15, 0
    %p113 = por %p111, %p112
    %s114 = ssub.s32 %s9, %s16
    %p115 = scmp.eq.s32.totalorder %s114, 0
    %s117 = sadd.s32 %s116, 1
    %s118 = scalar_select %p115, %s116, %s117
    %p121 = pneg %p115
    %p122 = scmp.eq.s32.totalorder %s9, 3
    %p123 = por %p121, %p122
    %p124 = scmp.ne.s32.totalorder %s116, %s119
    %p125 = scmp.eq.s32.totalorder %s9, 0
    %p126 = por %p124, %p125
    %p127 = scmp.ne.s32.totalorder %s116, %s119
    %p128 = scmp.eq.s32.totalorder %s14, 3
    %p129 = por %p127, %p128
    %p130 = scmp.ne.s32.totalorder %s119, %s120
    %p131 = scmp.eq.s32.totalorder %s14, 0
    %p132 = por %p130, %p131
    %p133 = scmp.ne.s32.totalorder %s119, %s120
    %p134 = scmp.eq.s32.totalorder %s15, 3
    %p135 = por %p133, %p134
    %p137 = scmp.ne.s32.totalorder %s120, %s136
    %p138 = scmp.eq.s32.totalorder %s15, 0
    %p139 = por %p137, %p138
    %p140 = scmp.le.s32.totalorder 1, %s9
    %p141 = scmp.lt.s32.totalorder %s9, 5
    %p142 = pnand %p140, %p141
    %p143 = pneg %p142
    // Predicated region
    $region9: #{embeddings_forward.1} parent=5 // pred_check
      _
    $region10: #{embeddings_forward.1} parent=5 // pred_check_branch
      %145 = sbr.rel (%p142) target = $region12
    $region11: #{embeddings_forward.1} parent=5 // pred_region
      %s146 = ssub.s32 %s9, 1
      // Predicated region
      $region13: #{embeddings_forward.1} parent=11 // pred_check
        %p147 = pneg %p56
      $region14: #{embeddings_forward.1} parent=11 // pred_check_branch
        %149 = sbr.rel (%p147) target = $region16
      $region15: #{embeddings_forward.1} parent=11 // pred_region
        _
      $region16: #{embeddings_forward.1} parent=11 // pred_fallthru
        _
    $region12: #{embeddings_forward.1} parent=5 // pred_fallthru
      _
    %p150 = scmp.lt.s32.totalorder %s9, 4
    // Predicated region
    $region17: #{embeddings_forward.1} parent=5 // pred_check
      %p151 = pneg %p150
    $region18: #{embeddings_forward.1} parent=5 // pred_check_branch
      %153 = sbr.rel (%p151) target = $region20
    $region19: #{embeddings_forward.1} parent=5 // pred_region
      // Predicated region
      $region21: #{embeddings_forward.1} parent=19 // pred_check
        %p154 = pneg %p29
      $region22: #{embeddings_forward.1} parent=19 // pred_check_branch
        %156 = sbr.rel (%p154) target = $region24
      $region23: #{embeddings_forward.1} parent=19 // pred_region
        %p157 = scmp.lt.s32.totalorder %s9, 3
        %s158 = scalar_select %p157, %s9, 3
        %s159 = smul.addr %s158, 8
        %s160 = smul.addr %s159, 8
        %s161 = scalar_lea.vmem %s0, %s160
      $region24: #{embeddings_forward.1} parent=19 // pred_fallthru
        _
      // Predicated region
      $region25: #{embeddings_forward.1} parent=19 // pred_check
        %p162 = pneg %p100
      $region26: #{embeddings_forward.1} parent=19 // pred_check_branch
        %164 = sbr.rel (%p162) target = $region28
      $region27: #{embeddings_forward.1} parent=19 // pred_region
        %p165 = scmp.lt.s32.totalorder %s9, 0
        %s166 = ssub.s32 0, %s9
        %s167 = scalar_select %p165, %s166, %s9
        %s168 = sand.u32 %s167, 1
        %s169 = ssub.s32 0, %s168
        %s170 = scalar_select %p165, %s169, %s168
        %p171 = scmp.ne.s32.totalorder %s170, 0
        %p172 = scmp.lt.s32.totalorder %s170, 0
        %p173 = pnand %p172, %p171
        %p174 = pneg %p173
        %s175 = sadd.s32 %s170, 2
        %s176 = scalar_select %p174, %s175, %s170
        %p177 = scmp.lt.s32.totalorder %s176, 1
        %s178 = scalar_select %p177, %s176, 1
        %s179 = smul.addr %s178, 8
        %s180 = scalar_lea.vmem %s2, %s179
        %p181 = scmp.lt.s32.totalorder %s9, 0
        %s182 = ssub.s32 0, %s9
        %s183 = scalar_select %p181, %s182, %s9
        %s184 = sand.u32 %s183, 1
        %s185 = ssub.s32 0, %s184
        %s186 = scalar_select %p181, %s185, %s184
        %p187 = scmp.ne.s32.totalorder %s186, 0
        %p188 = scmp.lt.s32.totalorder %s186, 0
        %p189 = pnand %p188, %p187
        %p190 = pneg %p189
        %s191 = sadd.s32 %s186, 2
        %s192 = scalar_select %p190, %s191, %s186
      $region28: #{embeddings_forward.1} parent=19 // pred_fallthru
        _
    $region20: #{embeddings_forward.1} parent=5 // pred_fallthru
      _
    %p193 = scmp.le.s32.totalorder 1, %s9
    %p194 = scmp.lt.s32.totalorder %s9, 5
    %p195 = pnand %p193, %p194
    %p196 = pneg %p195
    // Predicated region
    $region29: #{embeddings_forward.1} parent=5 // pred_check
      _
    $region30: #{embeddings_forward.1} parent=5 // pred_check_branch
      %198 = sbr.rel (%p195) target = $region32
    $region31: #{embeddings_forward.1} parent=5 // pred_region
      %s199 = ssub.s32 %s9, 1
      %p200 = scmp.lt.s32.totalorder %s14, 3
      %s201 = scalar_select %p200, %s14, 3
      %s202 = smul.addr %s201, 8
      %s203 = smul.addr %s202, 8
      %s204 = scalar_lea.vmem %s0, %s203
      %p205 = pneg %p35
      %p206 = pneg %p32
      %p207 = pneg %p56
      %p208 = pneg %p53
      %p209 = scmp.lt.s32.totalorder %s14, 0
      %s210 = ssub.s32 0, %s14
      %s211 = scalar_select %p209, %s210, %s14
      %s212 = sand.u32 %s211, 1
      %s213 = ssub.s32 0, %s212
      %s214 = scalar_select %p209, %s213, %s212
      %p215 = scmp.ne.s32.totalorder %s214, 0
      %p216 = scmp.lt.s32.totalorder %s214, 0
      %p217 = pnand %p216, %p215
      %p218 = pneg %p217
      %s219 = sadd.s32 %s214, 2
      %s220 = scalar_select %p218, %s219, %s214
      %p221 = scmp.lt.s32.totalorder %s220, 1
      %s222 = scalar_select %p221, %s220, 1
      %s223 = smul.addr %s222, 8
      %s224 = scalar_lea.vmem %s2, %s223
      %p225 = pneg %p106
      %p226 = pneg %p103
      %p227 = pneg %p132
      %p228 = pneg %p129
      %p229 = scmp.lt.s32.totalorder %s14, 3
      %s230 = scalar_select %p229, %s14, 3
      %s231 = smul.addr %s230, 8
      %s232 = scalar_lea.vmem %s3, %s231
      %p233 = scmp.lt.s32.totalorder %s14, 3
      %s234 = scalar_select %p233, %s14, 3
      %s235 = smul.addr %s234, 8
      %s236 = smul.addr %s235, 8
      %s237 = scalar_lea.vmem %s0, %s236
      %p238 = scmp.lt.s32.totalorder %s14, 0
      %s239 = ssub.s32 0, %s14
      %s240 = scalar_select %p238, %s239, %s14
      %s241 = sand.u32 %s240, 1
      %s242 = ssub.s32 0, %s241
      %s243 = scalar_select %p238, %s242, %s241
      %p244 = scmp.ne.s32.totalorder %s243, 0
      %p245 = scmp.lt.s32.totalorder %s243, 0
      %p246 = pnand %p245, %p244
      %p247 = pneg %p246
      %s248 = sadd.s32 %s243, 2
      %s249 = scalar_select %p247, %s248, %s243
      %p250 = scmp.lt.s32.totalorder %s249, 1
      %s251 = scalar_select %p250, %s249, 1
      %s252 = smul.addr %s251, 8
      %s253 = scalar_lea.vmem %s2, %s252
      %p254 = scmp.lt.s32.totalorder %s14, 0
      %s255 = ssub.s32 0, %s14
      %s256 = scalar_select %p254, %s255, %s14
      %s257 = sand.u32 %s256, 1
      %s258 = ssub.s32 0, %s257
      %s259 = scalar_select %p254, %s258, %s257
      %p260 = scmp.ne.s32.totalorder %s259, 0
      %p261 = scmp.lt.s32.totalorder %s259, 0
      %p262 = pnand %p261, %p260
      %p263 = pneg %p262
      %s264 = sadd.s32 %s259, 2
      %s265 = scalar_select %p263, %s264, %s259
      %p266 = scmp.lt.s32.totalorder %s14, 3
      %s267 = scalar_select %p266, %s14, 3
      %s268 = smul.addr %s267, 8
      %s269 = scalar_lea.vmem %s3, %s268
      %v270 = vld [vmem:[%s1] sm:$0xff]
      %v271 = vld [vmem:[%s1 + $0x8] sm:$0xff]
      %v272 = vld [vmem:[%s1 + $0x10] sm:$0xff]
      %v273 = vld [vmem:[%s1 + $0x18] sm:$0xff]
      %v274 = vld [vmem:[%s1 + $0x20] sm:$0xff]
      %v275 = vld [vmem:[%s1 + $0x28] sm:$0xff]
      %v276 = vld [vmem:[%s1 + $0x30] sm:$0xff]
      %v277 = vld [vmem:[%s1 + $0x38] sm:$0xff]
      %v278 = vld [vmem:[%s1 + $0x40] sm:$0xff]
      %v279 = vld [vmem:[%s1 + $0x48] sm:$0xff]
      %v280 = vld [vmem:[%s1 + $0x50] sm:$0xff]
      %v281 = vld [vmem:[%s1 + $0x58] sm:$0xff]
      %v282 = vld [vmem:[%s1 + $0x60] sm:$0xff]
      %v283 = vld [vmem:[%s1 + $0x68] sm:$0xff]
      %v284 = vld [vmem:[%s1 + $0x70] sm:$0xff]
      %v285 = vld [vmem:[%s1 + $0x78] sm:$0xff]
      %v286 = vld [vmem:[%s1 + $0x80] sm:$0xff]
      %v287 = vld [vmem:[%s1 + $0x88] sm:$0xff]
      %v288 = vld [vmem:[%s1 + $0x90] sm:$0xff]
      %v289 = vld [vmem:[%s1 + $0x98] sm:$0xff]
      %v290 = vld [vmem:[%s1 + $0xa0] sm:$0xff]
      %v291 = vld [vmem:[%s1 + $0xa8] sm:$0xff]
      %v292 = vld [vmem:[%s1 + $0xb0] sm:$0xff]
      %v293 = vld [vmem:[%s1 + $0xb8] sm:$0xff]
      %v294 = vld [vmem:[%s1 + $0xc0] sm:$0xff]
      %v295 = vld [vmem:[%s1 + $0xc8] sm:$0xff]
      %v296 = vld [vmem:[%s1 + $0xd0] sm:$0xff]
      %v297 = vld [vmem:[%s1 + $0xd8] sm:$0xff]
      %v298 = vld [vmem:[%s1 + $0xe0] sm:$0xff]
      %v299 = vld [vmem:[%s1 + $0xe8] sm:$0xff]
      %v300 = vld [vmem:[%s1 + $0xf0] sm:$0xff]
      %v301 = vld [vmem:[%s1 + $0xf8] sm:$0xff]
      %v302 = vld [vmem:[%s237] sm:$0xff]
      %v303 = vld [vmem:[%s237 + $0x8] sm:$0xff]
      %v304 = vld [vmem:[%s253] sm:$0xff]
      %305 = vmatpush.msra.mxu0 %v285
      %306 = vmatpush.msra.mxu0 %v284
      %307 = vmatpush.msra.mxu0 %v283
      %308 = vmatpush.msra.mxu0 %v282
      %309 = vmatpush.msra.mxu0 %v281
      %310 = vmatpush.msra.mxu0 %v280
      %311 = vmatpush.msra.mxu0 %v279
      %312 = vmatpush.msra.mxu0 %v278
      %313 = vmatpush.msra.mxu0 %v277
      %314 = vmatpush.msra.mxu0 %v276
      %315 = vmatpush.msra.mxu0 %v275
      %316 = vmatpush.msra.mxu0 %v274
      %317 = vmatpush.msra.mxu0 %v273
      %318 = vmatpush.msra.mxu0 %v272
      %319 = vmatpush.msra.mxu0 %v271
      %320 = vmatpush.msra.mxu0 %v270
      %321 = vmatmul.f32.gmra.mxu0 %v302
      %v322 = vpop.f32.mrf.mxu0
      %v323 = vadd.f32 %v304, %v322
      %324 = vdwg.mxu0
      %325 = vmatpush.msra.mxu0 %v301
      %326 = vmatpush.msra.mxu0 %v300
      %327 = vmatpush.msra.mxu0 %v299
      %328 = vmatpush.msra.mxu0 %v298
      %329 = vmatpush.msra.mxu0 %v297
      %330 = vmatpush.msra.mxu0 %v296
      %331 = vmatpush.msra.mxu0 %v295
      %332 = vmatpush.msra.mxu0 %v294
      %333 = vmatpush.msra.mxu0 %v293
      %334 = vmatpush.msra.mxu0 %v292
      %335 = vmatpush.msra.mxu0 %v291
      %336 = vmatpush.msra.mxu0 %v290
      %337 = vmatpush.msra.mxu0 %v289
      %338 = vmatpush.msra.mxu0 %v288
      %339 = vmatpush.msra.mxu0 %v287
      %340 = vmatpush.msra.mxu0 %v286
      %341 = vmatmul.f32.gmra.mxu0 %v303
      %v342 = vpop.f32.mrf.mxu0
      %v343 = vadd.f32 %v323, %v342
      %344 = vdwg.mxu0
      %vm345 = vcmask 261120
      %346 = vst.msk [vmem:[%s269] sm:$0xff] %vm345, %v343
      %v347 = vld [vmem:[%s237 + $0x10] sm:$0xff]
      %v348 = vld [vmem:[%s237 + $0x18] sm:$0xff]
      %v349 = vld [vmem:[%s253] sm:$0xff]
      %351 = vrot.lane.b32.xlu0 %v349, 96
      %v352 = vpop.permute.xlu0 %351
      %354 = vmatpush.msra.mxu0 %v285
      %355 = vmatpush.msra.mxu0 %v284
      %356 = vmatpush.msra.mxu0 %v283
      %357 = vmatpush.msra.mxu0 %v282
      %358 = vmatpush.msra.mxu0 %v281
      %359 = vmatpush.msra.mxu0 %v280
      %360 = vmatpush.msra.mxu0 %v279
      %361 = vmatpush.msra.mxu0 %v278
      %362 = vmatpush.msra.mxu0 %v277
      %363 = vmatpush.msra.mxu0 %v276
      %364 = vmatpush.msra.mxu0 %v275
      %365 = vmatpush.msra.mxu0 %v274
      %366 = vmatpush.msra.mxu0 %v273
      %367 = vmatpush.msra.mxu0 %v272
      %368 = vmatpush.msra.mxu0 %v271
      %369 = vmatpush.msra.mxu0 %v270
      %370 = vmatmul.f32.gmra.mxu0 %v347
      %v371 = vpop.f32.mrf.mxu0
      %v372 = vadd.f32 %v352, %v371
      %373 = vdwg.mxu0
      %374 = vmatpush.msra.mxu0 %v301
      %375 = vmatpush.msra.mxu0 %v300
      %376 = vmatpush.msra.mxu0 %v299
      %377 = vmatpush.msra.mxu0 %v298
      %378 = vmatpush.msra.mxu0 %v297
      %379 = vmatpush.msra.mxu0 %v296
      %380 = vmatpush.msra.mxu0 %v295
      %381 = vmatpush.msra.mxu0 %v294
      %382 = vmatpush.msra.mxu0 %v293
      %383 = vmatpush.msra.mxu0 %v292
      %384 = vmatpush.msra.mxu0 %v291
      %385 = vmatpush.msra.mxu0 %v290
      %386 = vmatpush.msra.mxu0 %v289
      %387 = vmatpush.msra.mxu0 %v288
      %388 = vmatpush.msra.mxu0 %v287
      %389 = vmatpush.msra.mxu0 %v286
      %390 = vmatmul.f32.gmra.mxu0 %v348
      %v391 = vpop.f32.mrf.mxu0
      %v392 = vadd.f32 %v372, %v391
      %393 = vdwg.mxu0
      %395 = vrot.lane.b32.xlu0 %v392, 32
      %v396 = vpop.permute.xlu0 %395
      %vm398 = vcmask 523520
      %399 = vst.msk [vmem:[%s269] sm:$0xff] %vm398, %v396
      %v400 = vld [vmem:[%s237 + $0x20] sm:$0xff]
      %v401 = vld [vmem:[%s237 + $0x28] sm:$0xff]
      %v402 = vld [vmem:[%s253] sm:$0xff]
      %404 = vrot.lane.b32.xlu0 %v402, 64
      %v405 = vpop.permute.xlu0 %404
      %407 = vmatpush.msra.mxu0 %v285
      %408 = vmatpush.msra.mxu0 %v284
      %409 = vmatpush.msra.mxu0 %v283
      %410 = vmatpush.msra.mxu0 %v282
      %411 = vmatpush.msra.mxu0 %v281
      %412 = vmatpush.msra.mxu0 %v280
      %413 = vmatpush.msra.mxu0 %v279
      %414 = vmatpush.msra.mxu0 %v278
      %415 = vmatpush.msra.mxu0 %v277
      %416 = vmatpush.msra.mxu0 %v276
      %417 = vmatpush.msra.mxu0 %v275
      %418 = vmatpush.msra.mxu0 %v274
      %419 = vmatpush.msra.mxu0 %v273
      %420 = vmatpush.msra.mxu0 %v272
      %421 = vmatpush.msra.mxu0 %v271
      %422 = vmatpush.msra.mxu0 %v270
      %423 = vmatmul.f32.gmra.mxu0 %v400
      %v424 = vpop.f32.mrf.mxu0
      %v425 = vadd.f32 %v405, %v424
      %426 = vdwg.mxu0
      %427 = vmatpush.msra.mxu0 %v301
      %428 = vmatpush.msra.mxu0 %v300
      %429 = vmatpush.msra.mxu0 %v299
      %430 = vmatpush.msra.mxu0 %v298
      %431 = vmatpush.msra.mxu0 %v297
      %432 = vmatpush.msra.mxu0 %v296
      %433 = vmatpush.msra.mxu0 %v295
      %434 = vmatpush.msra.mxu0 %v294
      %435 = vmatpush.msra.mxu0 %v293
      %436 = vmatpush.msra.mxu0 %v292
      %437 = vmatpush.msra.mxu0 %v291
      %438 = vmatpush.msra.mxu0 %v290
      %439 = vmatpush.msra.mxu0 %v289
      %440 = vmatpush.msra.mxu0 %v288
      %441 = vmatpush.msra.mxu0 %v287
      %442 = vmatpush.msra.mxu0 %v286
      %443 = vmatmul.f32.gmra.mxu0 %v401
      %v444 = vpop.f32.mrf.mxu0
      %v445 = vadd.f32 %v425, %v444
      %446 = vdwg.mxu0
      %448 = vrot.lane.b32.xlu0 %v445, 64
      %v449 = vpop.permute.xlu0 %448
      %vm451 = vcmask 785920
      %452 = vst.msk [vmem:[%s269] sm:$0xff] %vm451, %v449
      %v453 = vld [vmem:[%s237 + $0x30] sm:$0xff]
      %v454 = vld [vmem:[%s237 + $0x38] sm:$0xff]
      %v455 = vld [vmem:[%s253] sm:$0xff]
      %457 = vrot.lane.b32.xlu0 %v455, 32
      %v458 = vpop.permute.xlu0 %457
      %460 = vmatpush.msra.mxu0 %v285
      %461 = vmatpush.msra.mxu0 %v284
      %462 = vmatpush.msra.mxu0 %v283
      %463 = vmatpush.msra.mxu0 %v282
      %464 = vmatpush.msra.mxu0 %v281
      %465 = vmatpush.msra.mxu0 %v280
      %466 = vmatpush.msra.mxu0 %v279
      %467 = vmatpush.msra.mxu0 %v278
      %468 = vmatpush.msra.mxu0 %v277
      %469 = vmatpush.msra.mxu0 %v276
      %470 = vmatpush.msra.mxu0 %v275
      %471 = vmatpush.msra.mxu0 %v274
      %472 = vmatpush.msra.mxu0 %v273
      %473 = vmatpush.msra.mxu0 %v272
      %474 = vmatpush.msra.mxu0 %v271
      %475 = vmatpush.msra.mxu0 %v270
      %476 = vmatmul.f32.gmra.mxu0 %v453
      %v477 = vpop.f32.mrf.mxu0
      %v478 = vadd.f32 %v458, %v477
      %479 = vdwg.mxu0
      %480 = vmatpush.msra.mxu0 %v301
      %481 = vmatpush.msra.mxu0 %v300
      %482 = vmatpush.msra.mxu0 %v299
      %483 = vmatpush.msra.mxu0 %v298
      %484 = vmatpush.msra.mxu0 %v297
      %485 = vmatpush.msra.mxu0 %v296
      %486 = vmatpush.msra.mxu0 %v295
      %487 = vmatpush.msra.mxu0 %v294
      %488 = vmatpush.msra.mxu0 %v293
      %489 = vmatpush.msra.mxu0 %v292
      %490 = vmatpush.msra.mxu0 %v291
      %491 = vmatpush.msra.mxu0 %v290
      %492 = vmatpush.msra.mxu0 %v289
      %493 = vmatpush.msra.mxu0 %v288
      %494 = vmatpush.msra.mxu0 %v287
      %495 = vmatpush.msra.mxu0 %v286
      %496 = vmatmul.f32.gmra.mxu0 %v454
      %v497 = vpop.f32.mrf.mxu0
      %v498 = vadd.f32 %v478, %v497
      %499 = vdwg.mxu0
      %501 = vrot.lane.b32.xlu0 %v498, 96
      %v502 = vpop.permute.xlu0 %501
      %vm504 = vcmask 1048320
      %505 = vst.msk [vmem:[%s269] sm:$0xff] %vm504, %v502
      %p506 = scmp.lt.s32.totalorder %s14, 3
      %s507 = scalar_select %p506, %s14, 3
      %s508 = smul.addr %s507, 8
      %s509 = scalar_lea.vmem %s3, %s508
      // Predicated region
      $region33: #{embeddings_forward.1} parent=31 // pred_check
        %p510 = pneg %p129
      $region34: #{embeddings_forward.1} parent=31 // pred_check_branch
        %512 = sbr.rel (%p510) target = $region36
      $region35: #{embeddings_forward.1} parent=31 // pred_region
        _
      $region36: #{embeddings_forward.1} parent=31 // pred_fallthru
        _
    $region32: #{embeddings_forward.1} parent=5 // pred_fallthru
      _
    %p513 = scmp.le.s32.totalorder 2, %s9
    // Predicated region
    $region37: #{embeddings_forward.1} parent=5 // pred_check
      %p514 = pneg %p513
    $region38: #{embeddings_forward.1} parent=5 // pred_check_branch
      %516 = sbr.rel (%p514) target = $region40
    $region39: #{embeddings_forward.1} parent=5 // pred_region
      %s517 = ssub.s32 %s9, 2
      // Predicated region
      $region41: #{embeddings_forward.1} parent=39 // pred_check
        %p518 = pneg %p135
      $region42: #{embeddings_forward.1} parent=39 // pred_check_branch
        %520 = sbr.rel (%p518) target = $region44
      $region43: #{embeddings_forward.1} parent=39 // pred_region
        %p521 = scmp.lt.s32.totalorder %s15, 3
        %s522 = scalar_select %p521, %s15, 3
        %s523 = smul.addr %s522, 8
        %s524 = scalar_lea.vmem %s3, %s523
      $region44: #{embeddings_forward.1} parent=39 // pred_fallthru
        _
    $region40: #{embeddings_forward.1} parent=5 // pred_fallthru
      _
  $region6: #{embeddings_forward.1} parent=0 // loop_footer
    %s13 = sadd.s32 1, %s9
  $region7: #{embeddings_forward.1} parent=0 // loop_footer_branch
    %8 = sbr.rel target = $region3
  $region8: #{embeddings_forward.1} parent=0 // loop_exit
    _

</llo_original>
